<compile_context>
chip_gen: v5e
topology: v5e:2x2
jax: 0.10.0
libtpu: 0.0.40
codegen_flags: <defaults>
</compile_context>

<pallas_src>
import jax
import jax.numpy as jnp
from jax.experimental import pallas as pl
from jax.experimental.pallas import tpu as pltpu


def _round_up(x: int, m: int) -> int:
    return (x + m - 1) // m * m


# -----------------------------------------------------------------------------
# Pallas kernel: fused one-hot encoding + linear layer, computed transposed.
#   logits^T[:, col] = b + sum_k W[:, idx[k, col]]
# realized as a bf16 one-hot (D, tm) built in-register, then an MXU matmul
#   (N_sym, D) @ (D, tm) -> (N_sym, tm) f32, plus the f32 bias column.
# -----------------------------------------------------------------------------
def _loglinear_kernel(idx_ref, w_ref, b_ref, out_ref):
    # idx_ref: (n_ctx, TM) int32 — flattened one-hot row index in [0, D),
    #                              or -1 for invalid (j < n-1) / padded rows.
    # w_ref:   (N_sym, D)  bf16  — full weight matrix, VMEM-resident.
    # b_ref:   (N_sym, 1)  f32   — bias column.
    # out_ref: (N_sym, TM) f32   — logits^T tile (lane-dense, unmasked stores).
    n_ctx, tm = idx_ref.shape
    d = w_ref.shape[1]

    idx = idx_ref[...]                                           # (n_ctx, tm)
    d_iota = jax.lax.broadcasted_iota(jnp.int32, (d, tm), 0)     # one-hot rows

    # Transposed one-hot: hit[r, col] = any_k (idx[k, col] == r).
    # Per column the k indices are distinct (different residues mod n-1), so
    # OR == sum; the -1 sentinel never matches (d_iota >= 0) -> zero column,
    # i.e. bias-only logits, exactly like the torch encode() for j < n-1.
    hit = d_iota == idx[0:1, :]
    for k in range(1, n_ctx):                                    # static, tiny
        hit = jnp.logical_or(hit, d_iota == idx[k:k + 1, :])
    enc_t = hit.astype(jnp.bfloat16)                             # exact 0/1

    acc = jnp.dot(w_ref[...], enc_t, preferred_element_type=jnp.float32)
    out_ref[...] = acc + b_ref[...]


# -----------------------------------------------------------------------------
# Context-index preparation (plain JAX, 4*(n-1) bytes/token of int32 only):
#   ctx[k, b*L + j] = x[b, j-(n-1)+k] * (n-1) + k   if j >= n-1   else -1
# which is exactly the flattened row index of torch's
#   enc[sym, k] -> enc.flatten()[sym*(n-1)+k].
# -----------------------------------------------------------------------------
def build_ctx_indices(x, n):
    B, L = x.shape
    n_ctx = n - 1
    col = jnp.arange(L)
    rows = []
    for k in range(n_ctx):
        shift = n_ctx - k                      # context symbol sits at j - shift
        shifted = jnp.roll(x, shift, axis=1)   # wrapped values masked below
        flat = shifted.astype(jnp.int32) * n_ctx + k
        flat = jnp.where(col[None, :] >= n_ctx, flat, -1)   # first n-1 cols: zero enc
        rows.append(flat.reshape(1, B * L))
    return jnp.concatenate(rows, axis=0)       # (n-1, B*L) int32


# -----------------------------------------------------------------------------
# Full model forward:  x (B, L) int -> logits (B, L, N_sym)
# -----------------------------------------------------------------------------
def loglinear_forward(x, w, b, *, n, N_sym, tm=8192):
    B, L = x.shape
    n_ctx = n - 1
    D = N_sym * n_ctx
    assert w.shape == (N_sym, D) and b.shape == (N_sym,)

    M = B * L

    # Row tile: lane-dense multiple of 128, as large as reasonable (amortizes
    # the ~0.35 us per-grid-step overhead on this memory-bound kernel), capped
    # so double-buffered idx/out blocks + in-kernel one-hot temporaries stay
    # well inside VMEM on v5e / v6e / v7x.
    bytes_per_col = 2 * (n_ctx * 4 + N_sym * 4) + 6 * D * 4
    tm_cap = max(128, ((24 << 20) // bytes_per_col) // 128 * 128)
    tm = min(_round_up(tm, 128), _round_up(M, 128), tm_cap)
    M_pad = _round_up(M, tm)

    ctx = build_ctx_indices(x, n)                     # (n_ctx, M) int32
    if M_pad > M:
        ctx = jnp.pad(ctx, ((0, 0), (0, M_pad - M)), constant_values=-1)

    w_bf16 = w.astype(jnp.bfloat16)                   # exact: one-hot is 0/1
    b_col = b.reshape(N_sym, 1).astype(jnp.float32)

    grid = (M_pad // tm,)

    # Explicit VMEM budget: double-buffered idx/out blocks + resident W/bias
    # + in-kernel one-hot temporaries, plus headroom for compiler scratch.
    vmem_need = bytes_per_col * tm + 2 * (N_sym * D * 2 + N_sym * 4)
    vmem_limit = int(vmem_need) + (16 << 20)

    out_t = pl.pallas_call(
        _loglinear_kernel,
        out_shape=jax.ShapeDtypeStruct((N_sym, M_pad), jnp.float32),
        grid_spec=pltpu.PrefetchScalarGridSpec(
            num_scalar_prefetch=0,
            grid=grid,
            in_specs=[
                pl.BlockSpec((n_ctx, tm), lambda i: (0, i)),   # ctx indices (lane-dense)
                pl.BlockSpec((N_sym, D), lambda i: (0, 0)),    # full weights, resident
                pl.BlockSpec((N_sym, 1), lambda i: (0, 0)),    # bias column
            ],
            out_specs=pl.BlockSpec((N_sym, tm), lambda i: (0, i)),  # logits^T tile
        ),
        compiler_params=pltpu.CompilerParams(
            dimension_semantics=("parallel",),    # v7x: shard row tiles over 2 TCs
            vmem_limit_bytes=vmem_limit,
        ),
    )(ctx, w_bf16, b_col)

    # Wrapper-side layout plumbing: lane-dense (N_sym, M_pad) slab -> module
    # layout (B, L, N_sym); padded rows sliced off.
    return out_t[:, :M].T.reshape(B, L, N_sym)


# -----------------------------------------------------------------------------
# Pure-JAX reference (materialized one-hot encoding + dense layer), mirroring
# the PyTorch module's encode() + nn.Linear exactly.
# -----------------------------------------------------------------------------
def encode_one_hot_ref(x, n, N_sym):
    B, L = x.shape
    col = jnp.arange(L)
    pieces = []
    for k in range(n - 1):
        shift = (n - 1) - k
        shifted = jnp.roll(x, shift, axis=1)
        oh = jax.nn.one_hot(shifted, N_sym, dtype=jnp.float32)   # (B, L, N_sym)
        pieces.append(oh[..., None])
    enc = jnp.concatenate(pieces, axis=-1)                       # (B, L, N_sym, n-1)
    valid = (col >= (n - 1)).astype(jnp.float32)[None, :, None, None]
    enc = enc * valid
    return enc.reshape(B, L, N_sym * (n - 1))                    # row-major == torch flatten


if __name__ == "__main__":
    # Small shapes consistent with the module: method='one-hot', n=3, N_sym=8.
    n = 3
    N_sym = 8
    D = N_sym * (n - 1)          # 16
    B, L = 4, 500                # M = 2000

    key = jax.random.PRNGKey(0)
    kx, kw, kb = jax.random.split(key, 3)

    # Deterministic nn.Linear-style init: uniform(+-1/sqrt(D)).
    bound = 1.0 / jnp.sqrt(jnp.float32(D))
    w = jax.random.uniform(kw, (N_sym, D), jnp.float32, -bound, bound)
    b = jax.random.uniform(kb, (N_sym,), jnp.float32, -bound, bound)

    # Integer token ids in [0, N_sym).
    x = jax.random.randint(kx, (B, L), 0, N_sym, dtype=jnp.int32)

    # Reference: explicit one-hot encoding + f32 linear, using the same
    # bf16-rounded weights the kernel consumes (comparison is then exact-ish).
    w_q = w.astype(jnp.bfloat16).astype(jnp.float32)
    enc = encode_one_hot_ref(x, n, N_sym).reshape(B * L, D)
    ref = (jnp.einsum("md,nd->mn", enc, w_q,
                      precision=jax.lax.Precision.HIGHEST) + b).reshape(B, L, N_sym)

    # Default path (single big row tile, padded to a multiple of 128).
    logits = loglinear_forward(x, w, b, n=n, N_sym=N_sym)
    jax.block_until_ready(logits)
    assert logits.shape == (B, L, N_sym)
    assert jnp.allclose(logits, ref, atol=1e-5, rtol=1e-5), float(
        jnp.max(jnp.abs(logits - ref)))

    # Multi-tile + padded path (forces 4 grid steps of tm=512 over M_pad=2048).
    logits_mt = loglinear_forward(x, w, b, n=n, N_sym=N_sym, tm=512)
    jax.block_until_ready(logits_mt)
    assert jnp.allclose(logits_mt, ref, atol=1e-5, rtol=1e-5), float(
        jnp.max(jnp.abs(logits_mt - ref)))

    print("KERNEL_OK")
</pallas_src>

<mosaic_0001>
module attributes {stable_mosaic.version = 11 : i64} {
  func.func @_loglinear_kernel(%arg0: i32, %arg1: memref<2x2048xi32, #tpu.memory_space<vmem>>, %arg2: memref<8x16xbf16, #tpu.memory_space<vmem>>, %arg3: memref<8x1xf32, #tpu.memory_space<vmem>>, %arg4: memref<8x2048xf32, #tpu.memory_space<vmem>>) attributes {dimension_semantics = [#tpu.dimension_semantics<parallel>], iteration_bounds = array<i64: 1>, scalar_prefetch = 0 : i64, scratch_operands = 0 : i64, tpu.core_type = #tpu.core_type<tc>, window_params = [{transform_indices = @transform_0, window_bounds = array<i64: 2, 2048>}, {pipeline_mode = #tpu.pipeline_mode<synchronous>, transform_indices = @transform_1, window_bounds = array<i64: 8, 16>}, {pipeline_mode = #tpu.pipeline_mode<synchronous>, transform_indices = @transform_2, window_bounds = array<i64: 8, 1>}, {transform_indices = @transform_3, window_bounds = array<i64: 8, 2048>}]} {
    %c0 = arith.constant 0 : index
    %c0_0 = arith.constant 0 : index
    %0 = vector.load %arg1[%c0, %c0_0] : memref<2x2048xi32, #tpu.memory_space<vmem>>, vector<2x2048xi32>
    %1 = tpu.iota {dimensions = array<i32: 0>} : vector<16x2048xi32>
    %2 = vector.extract_strided_slice %0 {offsets = [0, 0], sizes = [1, 2048], strides = [1, 1]} : vector<2x2048xi32> to vector<1x2048xi32>
    %3 = vector.broadcast %2 : vector<1x2048xi32> to vector<16x2048xi32>
    %4 = arith.cmpi eq, %1, %3 : vector<16x2048xi32>
    %5 = vector.extract_strided_slice %0 {offsets = [1, 0], sizes = [1, 2048], strides = [1, 1]} : vector<2x2048xi32> to vector<1x2048xi32>
    %6 = vector.broadcast %5 : vector<1x2048xi32> to vector<16x2048xi32>
    %7 = arith.cmpi eq, %1, %6 : vector<16x2048xi32>
    %8 = arith.ori %4, %7 : vector<16x2048xi1>
    %9 = arith.extui %8 : vector<16x2048xi1> to vector<16x2048xi32>
    %10 = arith.sitofp %9 : vector<16x2048xi32> to vector<16x2048xf32>
    %11 = arith.truncf %10 : vector<16x2048xf32> to vector<16x2048xbf16>
    %c0_1 = arith.constant 0 : index
    %c0_2 = arith.constant 0 : index
    %12 = vector.load %arg2[%c0_1, %c0_2] : memref<8x16xbf16, #tpu.memory_space<vmem>>, vector<8x16xbf16>
    %cst = arith.constant dense<0.000000e+00> : vector<8x2048xf32>
    %13 = tpu.matmul %12, %11, %cst {dimension_numbers = #tpu.dot_dimension_numbers<[1], [0], [0], [1], [0, 0, 1, 1], [], []>} : vector<8x16xbf16>, vector<16x2048xbf16>, vector<8x2048xf32> -> vector<8x2048xf32>
    %c0_3 = arith.constant 0 : index
    %c0_4 = arith.constant 0 : index
    %14 = vector.load %arg3[%c0_3, %c0_4] : memref<8x1xf32, #tpu.memory_space<vmem>>, vector<8x1xf32>
    %15 = vector.broadcast %14 : vector<8x1xf32> to vector<8x2048xf32>
    %16 = arith.addf %13, %15 : vector<8x2048xf32>
    %c0_5 = arith.constant 0 : index
    %c0_6 = arith.constant 0 : index
    %17 = vector.load %arg4[%c0_5, %c0_6] : memref<8x2048xf32, #tpu.memory_space<vmem>>, vector<8x2048xf32>
    tpu.vector_store %arg4[%c0_5, %c0_6], %16 {strides = array<i32>} : memref<8x2048xf32, #tpu.memory_space<vmem>>, vector<8x2048xf32>,
    return
  }
  func.func @transform_0(%arg0: i32) -> (i32, i32) {
    %c0_i32 = arith.constant 0 : i32
    %c0_i32_0 = arith.constant 0 : i32
    return %c0_i32, %arg0 : i32, i32
  }
  func.func @transform_1(%arg0: i32) -> (i32, i32) {
    %c0_i32 = arith.constant 0 : i32
    %c0_i32_0 = arith.constant 0 : i32
    %c0_i32_1 = arith.constant 0 : i32
    return %c0_i32, %c0_i32_0 : i32, i32
  }
  func.func @transform_2(%arg0: i32) -> (i32, i32) {
    %c0_i32 = arith.constant 0 : i32
    %c0_i32_0 = arith.constant 0 : i32
    %c0_i32_1 = arith.constant 0 : i32
    return %c0_i32, %c0_i32_0 : i32, i32
  }
  func.func @transform_3(%arg0: i32) -> (i32, i32) {
    %c0_i32 = arith.constant 0 : i32
    %c0_i32_0 = arith.constant 0 : i32
    return %c0_i32, %arg0 : i32, i32
  }
}

</mosaic_0001>

<llo_original>
// kernel: tpu_custom_call.1
$region0: #{tpu_custom_call.1}
  #allocation0 [shape = 'u32[]', space=smem, size = 0x4, offset = 0x4, fixed_abs, tag = 'smem constant byte address 0x4 - core index']
  #allocation1 [shape = 'u32[72,128]{1,0:T(1,128)}', space=vmem, size = 0x9000, scoped, tag = 'internal scratch']
  %s0 = inlined_call_operand.hbm [shape: s32[2,2048], index: 0, kind: input, shape index: {}]
  %s1 = inlined_call_operand.vmem [shape: bf16[8,16], index: 1, kind: input, shape index: {}]
  %s2 = inlined_call_operand.vmem [shape: f32[8,1], index: 2, kind: input, shape index: {}]
  %s3 = inlined_call_operand.hbm [shape: f32[8,2048], index: 3, kind: output, shape index: {}]
  %s4 = sld [smem:[#allocation0]]
  $region26: #{tpu_custom_call.1} parent=0
    _
  %s6 = ssub.s32 1, %s4
  %s7 = scalar_select 0, %s6, %s4
  $region1: #{tpu_custom_call.1} parent=0
    #allocation2 [shape = 'u8[16384]{0}', space=vmem, size = 0x4000, scoped, tag = 'input window, operand 0, single buffered']
    #allocation3 [shape = 's32[1]{0}', space=sflag, size = 0x4, scoped, tag = 'scoped memory for tpu_custom_call.1']
    #allocation4 [shape = 's32[1]{0}', space=sflag, size = 0x4, scoped, tag = 'scoped memory for tpu_custom_call.1']
    #allocation5 [shape = 'u8[65536]{0}', space=vmem, size = 0x10000, scoped, tag = 'output window, operand 0, single buffered']
    %8 = vsyncpa [#allocation3], 0
    %9 = vsyncpa [#allocation4], 0
    // Predicated region
    $region2: #{tpu_custom_call.1} parent=1 // pred_check
      _
    $region3: #{tpu_custom_call.1} parent=1 // pred_check_branch
      %11 = sbr.rel (0) target = $region5
    $region4: #{tpu_custom_call.1} parent=1 // pred_region
      %13 = vsyncadd [#allocation3], 0
      %s15 = sshll.u32 %s0, 4
      %s16 = int_to_ptr.hbm [resolvable:$true] %s15
      %s17 = sshll.u32 [#allocation2], 4
      %s18 = int_to_ptr.vmem [resolvable:$true] %s17
      %20 = dma.hbm_to_vmem [thread:$0]  %s16, 512, %s18, [#allocation3]
    $region5: #{tpu_custom_call.1} parent=1 // pred_fallthru
      _
    // Predicated region
    $region6: #{tpu_custom_call.1} parent=1 // pred_check
      _
    $region7: #{tpu_custom_call.1} parent=1 // pred_check_branch
      %22 = sbr.rel (0) target = $region9
    $region8: #{tpu_custom_call.1} parent=1 // pred_region
      _
    $region9: #{tpu_custom_call.1} parent=1 // pred_fallthru
      _
    // Predicated region
    $region10: #{tpu_custom_call.1} parent=1 // pred_check
      _
    $region11: #{tpu_custom_call.1} parent=1 // pred_check_branch
      %24 = sbr.rel (0) target = $region13
    $region12: #{tpu_custom_call.1} parent=1 // pred_region
      _
    $region13: #{tpu_custom_call.1} parent=1 // pred_fallthru
      _
    // Predicated region
    $region14: #{tpu_custom_call.1} parent=1 // pred_check
      _
    $region15: #{tpu_custom_call.1} parent=1 // pred_check_branch
      %26 = sbr.rel (0) target = $region17
    $region16: #{tpu_custom_call.1} parent=1 // pred_region
      %28 = dma.done [#allocation3], 512
    $region17: #{tpu_custom_call.1} parent=1 // pred_fallthru
      _
    %v30 = vld [vmem:[#allocation2] sm:$0xff]
    %v31 = vld [vmem:[#allocation2 + $0x8] sm:$0xff]
    %v32 = vld [vmem:[#allocation2 + $0x10] sm:$0xff]
    %v33 = vld [vmem:[#allocation2 + $0x18] sm:$0xff]
    %v34 = vlaneseq
    %v35 = vshrl.u32 %v34, 7
    %v36 = vadd.s32 %v35, 8
    %v37 = vperm.slane %v30, 0
    %v38 = vperm.slane %v30, 2
    %v39 = vperm.slane %v30, 4
    %v40 = vperm.slane %v30, 6
    %v41 = vperm.slane %v31, 0
    %v42 = vperm.slane %v31, 2
    %v43 = vperm.slane %v31, 4
    %v44 = vperm.slane %v31, 6
    %v45 = vperm.slane %v32, 0
    %v46 = vperm.slane %v32, 2
    %v47 = vperm.slane %v32, 4
    %v48 = vperm.slane %v32, 6
    %v49 = vperm.slane %v33, 0
    %v50 = vperm.slane %v33, 2
    %v51 = vperm.slane %v33, 4
    %v52 = vperm.slane %v33, 6
    %v53 = vperm.slane %v37, 0
    %v54 = vperm.slane %v38, 0
    %v55 = vperm.slane %v39, 0
    %v56 = vperm.slane %v40, 0
    %v57 = vperm.slane %v41, 0
    %v58 = vperm.slane %v42, 0
    %v59 = vperm.slane %v43, 0
    %v60 = vperm.slane %v44, 0
    %v61 = vperm.slane %v45, 0
    %v62 = vperm.slane %v46, 0
    %v63 = vperm.slane %v47, 0
    %v64 = vperm.slane %v48, 0
    %v65 = vperm.slane %v49, 0
    %v66 = vperm.slane %v50, 0
    %v67 = vperm.slane %v51, 0
    %v68 = vperm.slane %v52, 0
    %vm69 = vcmp.eq.s32.totalorder %v35, %v53
    %vm70 = vcmp.eq.s32.totalorder %v35, %v54
    %vm71 = vcmp.eq.s32.totalorder %v35, %v55
    %vm72 = vcmp.eq.s32.totalorder %v35, %v56
    %vm73 = vcmp.eq.s32.totalorder %v35, %v57
    %vm74 = vcmp.eq.s32.totalorder %v35, %v58
    %vm75 = vcmp.eq.s32.totalorder %v35, %v59
    %vm76 = vcmp.eq.s32.totalorder %v35, %v60
    %vm77 = vcmp.eq.s32.totalorder %v35, %v61
    %vm78 = vcmp.eq.s32.totalorder %v35, %v62
    %vm79 = vcmp.eq.s32.totalorder %v35, %v63
    %vm80 = vcmp.eq.s32.totalorder %v35, %v64
    %vm81 = vcmp.eq.s32.totalorder %v35, %v65
    %vm82 = vcmp.eq.s32.totalorder %v35, %v66
    %vm83 = vcmp.eq.s32.totalorder %v35, %v67
    %vm84 = vcmp.eq.s32.totalorder %v35, %v68
    %vm85 = vcmp.eq.s32.totalorder %v36, %v53
    %vm86 = vcmp.eq.s32.totalorder %v36, %v54
    %vm87 = vcmp.eq.s32.totalorder %v36, %v55
    %vm88 = vcmp.eq.s32.totalorder %v36, %v56
    %vm89 = vcmp.eq.s32.totalorder %v36, %v57
    %vm90 = vcmp.eq.s32.totalorder %v36, %v58
    %vm91 = vcmp.eq.s32.totalorder %v36, %v59
    %vm92 = vcmp.eq.s32.totalorder %v36, %v60
    %vm93 = vcmp.eq.s32.totalorder %v36, %v61
    %vm94 = vcmp.eq.s32.totalorder %v36, %v62
    %vm95 = vcmp.eq.s32.totalorder %v36, %v63
    %vm96 = vcmp.eq.s32.totalorder %v36, %v64
    %vm97 = vcmp.eq.s32.totalorder %v36, %v65
    %vm98 = vcmp.eq.s32.totalorder %v36, %v66
    %vm99 = vcmp.eq.s32.totalorder %v36, %v67
    %vm100 = vcmp.eq.s32.totalorder %v36, %v68
    %v101 = vperm.slane %v30, 1
    %v102 = vperm.slane %v30, 3
    %v103 = vperm.slane %v30, 5
    %v104 = vperm.slane %v30, 7
    %v105 = vperm.slane %v31, 1
    %v106 = vperm.slane %v31, 3
    %v107 = vperm.slane %v31, 5
    %v108 = vperm.slane %v31, 7
    %v109 = vperm.slane %v32, 1
    %v110 = vperm.slane %v32, 3
    %v111 = vperm.slane %v32, 5
    %v112 = vperm.slane %v32, 7
    %v113 = vperm.slane %v33, 1
    %v114 = vperm.slane %v33, 3
    %v115 = vperm.slane %v33, 5
    %v116 = vperm.slane %v33, 7
    %v117 = vperm.slane %v101, 1
    %v118 = vperm.slane %v102, 1
    %v119 = vperm.slane %v103, 1
    %v120 = vperm.slane %v104, 1
    %v121 = vperm.slane %v105, 1
    %v122 = vperm.slane %v106, 1
    %v123 = vperm.slane %v107, 1
    %v124 = vperm.slane %v108, 1
    %v125 = vperm.slane %v109, 1
    %v126 = vperm.slane %v110, 1
    %v127 = vperm.slane %v111, 1
    %v128 = vperm.slane %v112, 1
    %v129 = vperm.slane %v113, 1
    %v130 = vperm.slane %v114, 1
    %v131 = vperm.slane %v115, 1
    %v132 = vperm.slane %v116, 1
    %vm133 = vcmp.eq.s32.totalorder %v35, %v117
    %vm134 = vcmp.eq.s32.totalorder %v35, %v118
    %vm135 = vcmp.eq.s32.totalorder %v35, %v119
    %vm136 = vcmp.eq.s32.totalorder %v35, %v120
    %vm137 = vcmp.eq.s32.totalorder %v35, %v121
    %vm138 = vcmp.eq.s32.totalorder %v35, %v122
    %vm139 = vcmp.eq.s32.totalorder %v35, %v123
    %vm140 = vcmp.eq.s32.totalorder %v35, %v124
    %vm141 = vcmp.eq.s32.totalorder %v35, %v125
    %vm142 = vcmp.eq.s32.totalorder %v35, %v126
    %vm143 = vcmp.eq.s32.totalorder %v35, %v127
    %vm144 = vcmp.eq.s32.totalorder %v35, %v128
    %vm145 = vcmp.eq.s32.totalorder %v35, %v129
    %vm146 = vcmp.eq.s32.totalorder %v35, %v130
    %vm147 = vcmp.eq.s32.totalorder %v35, %v131
    %vm148 = vcmp.eq.s32.totalorder %v35, %v132
    %vm149 = vcmp.eq.s32.totalorder %v36, %v117
    %vm150 = vcmp.eq.s32.totalorder %v36, %v118
    %vm151 = vcmp.eq.s32.totalorder %v36, %v119
    %vm152 = vcmp.eq.s32.totalorder %v36, %v120
    %vm153 = vcmp.eq.s32.totalorder %v36, %v121
    %vm154 = vcmp.eq.s32.totalorder %v36, %v122
    %vm155 = vcmp.eq.s32.totalorder %v36, %v123
    %vm156 = vcmp.eq.s32.totalorder %v36, %v124
    %vm157 = vcmp.eq.s32.totalorder %v36, %v125
    %vm158 = vcmp.eq.s32.totalorder %v36, %v126
    %vm159 = vcmp.eq.s32.totalorder %v36, %v127
    %vm160 = vcmp.eq.s32.totalorder %v36, %v128
    %vm161 = vcmp.eq.s32.totalorder %v36, %v129
    %vm162 = vcmp.eq.s32.totalorder %v36, %v130
    %vm163 = vcmp.eq.s32.totalorder %v36, %v131
    %vm164 = vcmp.eq.s32.totalorder %v36, %v132
    %vm165 = vmor %vm69, %vm133
    %vm166 = vmor %vm70, %vm134
    %vm167 = vmor %vm71, %vm135
    %vm168 = vmor %vm72, %vm136
    %vm169 = vmor %vm73, %vm137
    %vm170 = vmor %vm74, %vm138
    %vm171 = vmor %vm75, %vm139
    %vm172 = vmor %vm76, %vm140
    %vm173 = vmor %vm77, %vm141
    %vm174 = vmor %vm78, %vm142
    %vm175 = vmor %vm79, %vm143
    %vm176 = vmor %vm80, %vm144
    %vm177 = vmor %vm81, %vm145
    %vm178 = vmor %vm82, %vm146
    %vm179 = vmor %vm83, %vm147
    %vm180 = vmor %vm84, %vm148
    %vm181 = vmor %vm85, %vm149
    %vm182 = vmor %vm86, %vm150
    %vm183 = vmor %vm87, %vm151
    %vm184 = vmor %vm88, %vm152
    %vm185 = vmor %vm89, %vm153
    %vm186 = vmor %vm90, %vm154
    %vm187 = vmor %vm91, %vm155
    %vm188 = vmor %vm92, %vm156
    %vm189 = vmor %vm93, %vm157
    %vm190 = vmor %vm94, %vm158
    %vm191 = vmor %vm95, %vm159
    %vm192 = vmor %vm96, %vm160
    %vm193 = vmor %vm97, %vm161
    %vm194 = vmor %vm98, %vm162
    %vm195 = vmor %vm99, %vm163
    %vm196 = vmor %vm100, %vm164
    %v197 = vsel %vm165, 1, 0
    %v198 = vsel %vm166, 1, 0
    %v199 = vsel %vm167, 1, 0
    %v200 = vsel %vm168, 1, 0
    %v201 = vsel %vm169, 1, 0
    %v202 = vsel %vm170, 1, 0
    %v203 = vsel %vm171, 1, 0
    %v204 = vsel %vm172, 1, 0
    %v205 = vsel %vm173, 1, 0
    %v206 = vsel %vm174, 1, 0
    %v207 = vsel %vm175, 1, 0
    %v208 = vsel %vm176, 1, 0
    %v209 = vsel %vm177, 1, 0
    %v210 = vsel %vm178, 1, 0
    %v211 = vsel %vm179, 1, 0
    %v212 = vsel %vm180, 1, 0
    %v213 = vsel %vm181, 1, 0
    %v214 = vsel %vm182, 1, 0
    %v215 = vsel %vm183, 1, 0
    %v216 = vsel %vm184, 1, 0
    %v217 = vsel %vm185, 1, 0
    %v218 = vsel %vm186, 1, 0
    %v219 = vsel %vm187, 1, 0
    %v220 = vsel %vm188, 1, 0
    %v221 = vsel %vm189, 1, 0
    %v222 = vsel %vm190, 1, 0
    %v223 = vsel %vm191, 1, 0
    %v224 = vsel %vm192, 1, 0
    %v225 = vsel %vm193, 1, 0
    %v226 = vsel %vm194, 1, 0
    %v227 = vsel %vm195, 1, 0
    %v228 = vsel %vm196, 1, 0
    %v229 = vcvt.s32.f32 %v197
    %v230 = vcvt.s32.f32 %v198
    %v231 = vcvt.s32.f32 %v199
    %v232 = vcvt.s32.f32 %v200
    %v233 = vcvt.s32.f32 %v201
    %v234 = vcvt.s32.f32 %v202
    %v235 = vcvt.s32.f32 %v203
    %v236 = vcvt.s32.f32 %v204
    %v237 = vcvt.s32.f32 %v205
    %v238 = vcvt.s32.f32 %v206
    %v239 = vcvt.s32.f32 %v207
    %v240 = vcvt.s32.f32 %v208
    %v241 = vcvt.s32.f32 %v209
    %v242 = vcvt.s32.f32 %v210
    %v243 = vcvt.s32.f32 %v211
    %v244 = vcvt.s32.f32 %v212
    %v245 = vcvt.s32.f32 %v213
    %v246 = vcvt.s32.f32 %v214
    %v247 = vcvt.s32.f32 %v215
    %v248 = vcvt.s32.f32 %v216
    %v249 = vcvt.s32.f32 %v217
    %v250 = vcvt.s32.f32 %v218
    %v251 = vcvt.s32.f32 %v219
    %v252 = vcvt.s32.f32 %v220
    %v253 = vcvt.s32.f32 %v221
    %v254 = vcvt.s32.f32 %v222
    %v255 = vcvt.s32.f32 %v223
    %v256 = vcvt.s32.f32 %v224
    %v257 = vcvt.s32.f32 %v225
    %v258 = vcvt.s32.f32 %v226
    %v259 = vcvt.s32.f32 %v227
    %v260 = vcvt.s32.f32 %v228
    %v261 = vpack.c.bf16 %v245, %v229
    %v262 = vpack.c.bf16 %v246, %v230
    %v263 = vpack.c.bf16 %v247, %v231
    %v264 = vpack.c.bf16 %v248, %v232
    %v265 = vpack.c.bf16 %v249, %v233
    %v266 = vpack.c.bf16 %v250, %v234
    %v267 = vpack.c.bf16 %v251, %v235
    %v268 = vpack.c.bf16 %v252, %v236
    %v269 = vpack.c.bf16 %v253, %v237
    %v270 = vpack.c.bf16 %v254, %v238
    %v271 = vpack.c.bf16 %v255, %v239
    %v272 = vpack.c.bf16 %v256, %v240
    %v273 = vpack.c.bf16 %v257, %v241
    %v274 = vpack.c.bf16 %v258, %v242
    %v275 = vpack.c.bf16 %v259, %v243
    %v276 = vpack.c.bf16 %v260, %v244
    %v277 = vld [vmem:[%s1] sm:$0xf]
    %v278 = vld [vmem:[%s2] sm:$0xff]
    %280 = vset.pattern.permute.xlu0 0
    %281 = vperm.xlu0 %280, %v278
    %v282 = vpop.permute.xlu0 %281
    %vm284 = vcmask 130048
    %v286 = vsel %vm284, %v277, 0
    %288 = vmatpush.bf16.msra.mxu0 0
    %289 = vmatpush.bf16.msra.mxu0 0
    %290 = vmatpush.bf16.msra.mxu0 0
    %291 = vmatpush.bf16.msra.mxu0 0
    %292 = vmatpush.bf16.msra.mxu0 0
    %293 = vmatpush.bf16.msra.mxu0 0
    %294 = vmatpush.bf16.msra.mxu0 0
    %295 = vmatpush.bf16.msra.mxu0 %v261
    %296 = vmatmul.bf16.gmra.mxu0 %v286
    %v297 = vpop.f32.mrf.mxu0
    %v298 = vadd.f32 %v282, %v297
    %v299 = vpop.f32.mrf.mxu0
    %300 = vdwg.mxu0
    %301 = vmatpush.bf16.msra.mxu0 0
    %302 = vmatpush.bf16.msra.mxu0 0
    %303 = vmatpush.bf16.msra.mxu0 0
    %304 = vmatpush.bf16.msra.mxu0 0
    %305 = vmatpush.bf16.msra.mxu0 0
    %306 = vmatpush.bf16.msra.mxu0 0
    %307 = vmatpush.bf16.msra.mxu0 0
    %308 = vmatpush.bf16.msra.mxu0 %v262
    %309 = vmatmul.bf16.gmra.mxu0 %v286
    %v310 = vpop.f32.mrf.mxu0
    %v311 = vadd.f32 %v282, %v310
    %v312 = vpop.f32.mrf.mxu0
    %313 = vdwg.mxu0
    %314 = vmatpush.bf16.msra.mxu0 0
    %315 = vmatpush.bf16.msra.mxu0 0
    %316 = vmatpush.bf16.msra.mxu0 0
    %317 = vmatpush.bf16.msra.mxu0 0
    %318 = vmatpush.bf16.msra.mxu0 0
    %319 = vmatpush.bf16.msra.mxu0 0
    %320 = vmatpush.bf16.msra.mxu0 0
    %321 = vmatpush.bf16.msra.mxu0 %v263
    %322 = vmatmul.bf16.gmra.mxu0 %v286
    %v323 = vpop.f32.mrf.mxu0
    %v324 = vadd.f32 %v282, %v323
    %v325 = vpop.f32.mrf.mxu0
    %326 = vdwg.mxu0
    %327 = vmatpush.bf16.msra.mxu0 0
    %328 = vmatpush.bf16.msra.mxu0 0
    %329 = vmatpush.bf16.msra.mxu0 0
    %330 = vmatpush.bf16.msra.mxu0 0
    %331 = vmatpush.bf16.msra.mxu0 0
    %332 = vmatpush.bf16.msra.mxu0 0
    %333 = vmatpush.bf16.msra.mxu0 0
    %334 = vmatpush.bf16.msra.mxu0 %v264
    %335 = vmatmul.bf16.gmra.mxu0 %v286
    %v336 = vpop.f32.mrf.mxu0
    %v337 = vadd.f32 %v282, %v336
    %v338 = vpop.f32.mrf.mxu0
    %339 = vdwg.mxu0
    %340 = vmatpush.bf16.msra.mxu0 0
    %341 = vmatpush.bf16.msra.mxu0 0
    %342 = vmatpush.bf16.msra.mxu0 0
    %343 = vmatpush.bf16.msra.mxu0 0
    %344 = vmatpush.bf16.msra.mxu0 0
    %345 = vmatpush.bf16.msra.mxu0 0
    %346 = vmatpush.bf16.msra.mxu0 0
    %347 = vmatpush.bf16.msra.mxu0 %v265
    %348 = vmatmul.bf16.gmra.mxu0 %v286
    %v349 = vpop.f32.mrf.mxu0
    %v350 = vadd.f32 %v282, %v349
    %v351 = vpop.f32.mrf.mxu0
    %352 = vdwg.mxu0
    %353 = vmatpush.bf16.msra.mxu0 0
    %354 = vmatpush.bf16.msra.mxu0 0
    %355 = vmatpush.bf16.msra.mxu0 0
    %356 = vmatpush.bf16.msra.mxu0 0
    %357 = vmatpush.bf16.msra.mxu0 0
    %358 = vmatpush.bf16.msra.mxu0 0
    %359 = vmatpush.bf16.msra.mxu0 0
    %360 = vmatpush.bf16.msra.mxu0 %v266
    %361 = vmatmul.bf16.gmra.mxu0 %v286
    %v362 = vpop.f32.mrf.mxu0
    %v363 = vadd.f32 %v282, %v362
    %v364 = vpop.f32.mrf.mxu0
    %365 = vdwg.mxu0
    %366 = vmatpush.bf16.msra.mxu0 0
    %367 = vmatpush.bf16.msra.mxu0 0
    %368 = vmatpush.bf16.msra.mxu0 0
    %369 = vmatpush.bf16.msra.mxu0 0
    %370 = vmatpush.bf16.msra.mxu0 0
    %371 = vmatpush.bf16.msra.mxu0 0
    %372 = vmatpush.bf16.msra.mxu0 0
    %373 = vmatpush.bf16.msra.mxu0 %v267
    %374 = vmatmul.bf16.gmra.mxu0 %v286
    %v375 = vpop.f32.mrf.mxu0
    %v376 = vadd.f32 %v282, %v375
    %v377 = vpop.f32.mrf.mxu0
    %378 = vdwg.mxu0
    %379 = vmatpush.bf16.msra.mxu0 0
    %380 = vmatpush.bf16.msra.mxu0 0
    %381 = vmatpush.bf16.msra.mxu0 0
    %382 = vmatpush.bf16.msra.mxu0 0
    %383 = vmatpush.bf16.msra.mxu0 0
    %384 = vmatpush.bf16.msra.mxu0 0
    %385 = vmatpush.bf16.msra.mxu0 0
    %386 = vmatpush.bf16.msra.mxu0 %v268
    %387 = vmatmul.bf16.gmra.mxu0 %v286
    %v388 = vpop.f32.mrf.mxu0
    %v389 = vadd.f32 %v282, %v388
    %v390 = vpop.f32.mrf.mxu0
    %391 = vdwg.mxu0
    %392 = vmatpush.bf16.msra.mxu0 0
    %393 = vmatpush.bf16.msra.mxu0 0
    %394 = vmatpush.bf16.msra.mxu0 0
    %395 = vmatpush.bf16.msra.mxu0 0
    %396 = vmatpush.bf16.msra.mxu0 0
    %397 = vmatpush.bf16.msra.mxu0 0
    %398 = vmatpush.bf16.msra.mxu0 0
    %399 = vmatpush.bf16.msra.mxu0 %v269
    %400 = vmatmul.bf16.gmra.mxu0 %v286
    %v401 = vpop.f32.mrf.mxu0
    %v402 = vadd.f32 %v282, %v401
    %v403 = vpop.f32.mrf.mxu0
    %404 = vdwg.mxu0
    %405 = vmatpush.bf16.msra.mxu0 0
    %406 = vmatpush.bf16.msra.mxu0 0
    %407 = vmatpush.bf16.msra.mxu0 0
    %408 = vmatpush.bf16.msra.mxu0 0
    %409 = vmatpush.bf16.msra.mxu0 0
    %410 = vmatpush.bf16.msra.mxu0 0
    %411 = vmatpush.bf16.msra.mxu0 0
    %412 = vmatpush.bf16.msra.mxu0 %v270
    %413 = vmatmul.bf16.gmra.mxu0 %v286
    %v414 = vpop.f32.mrf.mxu0
    %v415 = vadd.f32 %v282, %v414
    %v416 = vpop.f32.mrf.mxu0
    %417 = vdwg.mxu0
    %418 = vmatpush.bf16.msra.mxu0 0
    %419 = vmatpush.bf16.msra.mxu0 0
    %420 = vmatpush.bf16.msra.mxu0 0
    %421 = vmatpush.bf16.msra.mxu0 0
    %422 = vmatpush.bf16.msra.mxu0 0
    %423 = vmatpush.bf16.msra.mxu0 0
    %424 = vmatpush.bf16.msra.mxu0 0
    %425 = vmatpush.bf16.msra.mxu0 %v271
    %426 = vmatmul.bf16.gmra.mxu0 %v286
    %v427 = vpop.f32.mrf.mxu0
    %v428 = vadd.f32 %v282, %v427
    %v429 = vpop.f32.mrf.mxu0
    %430 = vdwg.mxu0
    %431 = vmatpush.bf16.msra.mxu0 0
    %432 = vmatpush.bf16.msra.mxu0 0
    %433 = vmatpush.bf16.msra.mxu0 0
    %434 = vmatpush.bf16.msra.mxu0 0
    %435 = vmatpush.bf16.msra.mxu0 0
    %436 = vmatpush.bf16.msra.mxu0 0
    %437 = vmatpush.bf16.msra.mxu0 0
    %438 = vmatpush.bf16.msra.mxu0 %v272
    %439 = vmatmul.bf16.gmra.mxu0 %v286
    %v440 = vpop.f32.mrf.mxu0
    %v441 = vadd.f32 %v282, %v440
    %v442 = vpop.f32.mrf.mxu0
    %443 = vdwg.mxu0
    %444 = vmatpush.bf16.msra.mxu0 0
    %445 = vmatpush.bf16.msra.mxu0 0
    %446 = vmatpush.bf16.msra.mxu0 0
    %447 = vmatpush.bf16.msra.mxu0 0
    %448 = vmatpush.bf16.msra.mxu0 0
    %449 = vmatpush.bf16.msra.mxu0 0
    %450 = vmatpush.bf16.msra.mxu0 0
    %451 = vmatpush.bf16.msra.mxu0 %v273
    %452 = vmatmul.bf16.gmra.mxu0 %v286
    %v453 = vpop.f32.mrf.mxu0
    %v454 = vadd.f32 %v282, %v453
    %v455 = vpop.f32.mrf.mxu0
    %456 = vdwg.mxu0
    %457 = vmatpush.bf16.msra.mxu0 0
    %458 = vmatpush.bf16.msra.mxu0 0
    %459 = vmatpush.bf16.msra.mxu0 0
    %460 = vmatpush.bf16.msra.mxu0 0
    %461 = vmatpush.bf16.msra.mxu0 0
    %462 = vmatpush.bf16.msra.mxu0 0
    %463 = vmatpush.bf16.msra.mxu0 0
    %464 = vmatpush.bf16.msra.mxu0 %v274
    %465 = vmatmul.bf16.gmra.mxu0 %v286
    %v466 = vpop.f32.mrf.mxu0
    %v467 = vadd.f32 %v282, %v466
    %v468 = vpop.f32.mrf.mxu0
    %469 = vdwg.mxu0
    %470 = vmatpush.bf16.msra.mxu0 0
    %471 = vmatpush.bf16.msra.mxu0 0
    %472 = vmatpush.bf16.msra.mxu0 0
    %473 = vmatpush.bf16.msra.mxu0 0
    %474 = vmatpush.bf16.msra.mxu0 0
    %475 = vmatpush.bf16.msra.mxu0 0
    %476 = vmatpush.bf16.msra.mxu0 0
    %477 = vmatpush.bf16.msra.mxu0 %v275
    %478 = vmatmul.bf16.gmra.mxu0 %v286
    %v479 = vpop.f32.mrf.mxu0
    %v480 = vadd.f32 %v282, %v479
    %v481 = vpop.f32.mrf.mxu0
    %482 = vdwg.mxu0
    %483 = vmatpush.bf16.msra.mxu0 0
    %484 = vmatpush.bf16.msra.mxu0 0
    %485 = vmatpush.bf16.msra.mxu0 0
    %486 = vmatpush.bf16.msra.mxu0 0
    %487 = vmatpush.bf16.msra.mxu0 0
    %488 = vmatpush.bf16.msra.mxu0 0
    %489 = vmatpush.bf16.msra.mxu0 0
    %490 = vmatpush.bf16.msra.mxu0 %v276
    %491 = vmatmul.bf16.gmra.mxu0 %v286
    %v492 = vpop.f32.mrf.mxu0
    %v493 = vadd.f32 %v282, %v492
    %v494 = vpop.f32.mrf.mxu0
    %495 = vdwg.mxu0
    %496 = vst [vmem:[#allocation5] sm:$0xff] %v298
    %497 = vst [vmem:[#allocation5 + $0x8] sm:$0xff] %v311
    %498 = vst [vmem:[#allocation5 + $0x10] sm:$0xff] %v324
    %499 = vst [vmem:[#allocation5 + $0x18] sm:$0xff] %v337
    %500 = vst [vmem:[#allocation5 + $0x20] sm:$0xff] %v350
    %501 = vst [vmem:[#allocation5 + $0x28] sm:$0xff] %v363
    %502 = vst [vmem:[#allocation5 + $0x30] sm:$0xff] %v376
    %503 = vst [vmem:[#allocation5 + $0x38] sm:$0xff] %v389
    %504 = vst [vmem:[#allocation5 + $0x40] sm:$0xff] %v402
    %505 = vst [vmem:[#allocation5 + $0x48] sm:$0xff] %v415
    %506 = vst [vmem:[#allocation5 + $0x50] sm:$0xff] %v428
    %507 = vst [vmem:[#allocation5 + $0x58] sm:$0xff] %v441
    %508 = vst [vmem:[#allocation5 + $0x60] sm:$0xff] %v454
    %509 = vst [vmem:[#allocation5 + $0x68] sm:$0xff] %v467
    %510 = vst [vmem:[#allocation5 + $0x70] sm:$0xff] %v480
    %511 = vst [vmem:[#allocation5 + $0x78] sm:$0xff] %v493
    // Predicated region
    $region18: #{tpu_custom_call.1} parent=1 // pred_check
      _
    $region19: #{tpu_custom_call.1} parent=1 // pred_check_branch
      %513 = sbr.rel (0) target = $region21
    $region20: #{tpu_custom_call.1} parent=1 // pred_region
      %515 = vsyncadd [#allocation4], 0
      %s517 = sshll.u32 [#allocation5], 4
      %s518 = int_to_ptr.vmem [resolvable:$true] %s517
      %s519 = sshll.u32 %s3, 4
      %s520 = int_to_ptr.hbm [resolvable:$true] %s519
      %522 = dma.vmem_to_hbm [thread:$0]  %s518, 2048, %s520, [#allocation4]
    $region21: #{tpu_custom_call.1} parent=1 // pred_fallthru
      _
    // Predicated region
    $region22: #{tpu_custom_call.1} parent=1 // pred_check
      _
    $region23: #{tpu_custom_call.1} parent=1 // pred_check_branch
      %524 = sbr.rel (0) target = $region25
    $region24: #{tpu_custom_call.1} parent=1 // pred_region
      %526 = dma.done [#allocation4], 2048
    $region25: #{tpu_custom_call.1} parent=1 // pred_fallthru
      _
    %527 = vsyncpa [#allocation3], 1
    %528 = vsyncpa [#allocation4], 1

</llo_original>
